<compile_context>
chip_gen: v6e
topology: v6e:2x2x1
jax: 0.10.0
libtpu: 0.0.40
codegen_flags: <defaults>
</compile_context>

<pallas_src>
import functools

import jax
import jax.numpy as jnp
from jax.experimental import pallas as pl
from jax.experimental.pallas import tpu as pltpu


SAMPLES_PER_ROW = 16          # 16 samples x 8 features = 128 lanes
IN_FEATURES = 8


def _round_up(n, m):
    return ((n + m - 1) // m) * m


def mlp_kernel(x_ref, w1_ref, b1_ref, w2_ref, b2_ref, w3_ref, b3_ref, o_ref):
    # x_ref : (tile_r, 128) -- 16 samples per row, lane-dense
    # w*_ref: block-diagonal replicated weights, resident in VMEM across grid
    # o_ref : (tile_r, 16)  -- one scalar output per sample
    x = x_ref[...]
    h1 = jnp.dot(x, w1_ref[...], preferred_element_type=jnp.float32) + b1_ref[...]
    h1 = jnp.maximum(h1, 0.0)
    h2 = jnp.dot(h1, w2_ref[...], preferred_element_type=jnp.float32) + b2_ref[...]
    h2 = jnp.maximum(h2, 0.0)
    y = jnp.dot(h2, w3_ref[...], preferred_element_type=jnp.float32) + b3_ref[...]
    o_ref[...] = y.astype(o_ref.dtype)


def pack_params(w1, b1, w2, b2, w3, b3, dtype=jnp.float32):
    """Replicate PyTorch-layout weights block-diagonally (16 copies).

    w*: (out, in) as in torch.nn.Linear, b*: (out,).
    """
    eye = jnp.eye(SAMPLES_PER_ROW, dtype=dtype)
    W1 = jnp.kron(eye, w1.T.astype(dtype))                              # (128, 64)
    W2 = jnp.kron(eye, w2.T.astype(dtype))                              # (64, 64)
    W3 = jnp.kron(eye, w3.T.astype(dtype))                              # (64, 16)
    B1 = jnp.tile(b1.astype(dtype), SAMPLES_PER_ROW).reshape(1, -1)     # (1, 64)
    B2 = jnp.tile(b2.astype(dtype), SAMPLES_PER_ROW).reshape(1, -1)     # (1, 64)
    B3 = jnp.tile(b3.astype(dtype), SAMPLES_PER_ROW).reshape(1, -1)     # (1, 16)
    return W1, B1, W2, B2, W3, B3


def _choose_tile_r(n_rows, target_rows):
    # Small batches: one tile equal to the full extent (satisfies block rules).
    if n_rows < 16:
        return n_rows
    # Otherwise keep the grid length >= 2 so v7x's two TensorCores both get
    # work, and cap the tile at the target (2048 rows = 32K samples = 1 MiB).
    half = _round_up(pl.cdiv(n_rows, 2), 8)
    return min(target_rows, half)


@functools.partial(jax.jit, static_argnames=("tile_rows",))
def mlp_forward(x, params, *, tile_rows=2048):
    """x: (B, 8) -> (B, 1), same semantics as the PyTorch module."""
    W1, B1, W2, B2, W3, B3 = params
    B = x.shape[0]

    # Pad batch to a multiple of 16 only when needed (zero-cost for aligned B),
    # then view (B_pad, 8) as (B_pad/16, 128).  Contiguous row-major reshape,
    # so no transpose and no extra HBM pass over x.
    b_pad = _round_up(B, SAMPLES_PER_ROW)
    if b_pad != B:
        x = jnp.pad(x, ((0, b_pad - B), (0, 0)))
    n_rows = b_pad // SAMPLES_PER_ROW
    x_r = x.reshape(n_rows, SAMPLES_PER_ROW * IN_FEATURES)              # (R, 128)

    tile_r = _choose_tile_r(n_rows, tile_rows)
    grid = (pl.cdiv(n_rows, tile_r),)

    const = lambda i: (0, 0)
    out = pl.pallas_call(
        mlp_kernel,
        out_shape=jax.ShapeDtypeStruct((n_rows, SAMPLES_PER_ROW), x.dtype),
        grid=grid,
        in_specs=[
            pl.BlockSpec((tile_r, 128), lambda i: (i, 0)),   # streamed x tiles
            pl.BlockSpec((128, 64), const),                  # W1 (resident)
            pl.BlockSpec((1, 64), const),                    # b1
            pl.BlockSpec((64, 64), const),                   # W2
            pl.BlockSpec((1, 64), const),                    # b2
            pl.BlockSpec((64, 16), const),                   # W3
            pl.BlockSpec((1, 16), const),                    # b3
        ],
        out_specs=pl.BlockSpec((tile_r, SAMPLES_PER_ROW), lambda i: (i, 0)),
        compiler_params=pltpu.CompilerParams(
            dimension_semantics=("parallel",),               # 2-TC sharding on v7x
        ),
    )(x_r, W1, B1, W2, B2, W3, B3)

    # (R, 16) -> (B_pad, 1) is again a free contiguous reshape; drop padding.
    return out.reshape(b_pad, 1)[:B]


def init_params(key):
    # Deterministic init mimicking torch.nn.Linear defaults:
    # uniform(-1/sqrt(fan_in), 1/sqrt(fan_in)), weights in (out, in) layout.
    def linear(key, fan_in, fan_out):
        kw, kb = jax.random.split(key)
        bound = 1.0 / jnp.sqrt(fan_in)
        w = jax.random.uniform(kw, (fan_out, fan_in), jnp.float32, -bound, bound)
        b = jax.random.uniform(kb, (fan_out,), jnp.float32, -bound, bound)
        return w, b

    k1, k2, k3 = jax.random.split(key, 3)
    w1, b1 = linear(k1, 8, 4)
    w2, b2 = linear(k2, 4, 4)
    w3, b3 = linear(k3, 4, 1)
    return w1, b1, w2, b2, w3, b3


if __name__ == "__main__":
    key = jax.random.PRNGKey(0)
    kx, kp = jax.random.split(key)

    B = 8
    x = jax.random.normal(kx, (B, 8), jnp.float32)
    w1, b1, w2, b2, w3, b3 = init_params(kp)
    params = pack_params(w1, b1, w2, b2, w3, b3)

    y = mlp_forward(x, params)
    jax.block_until_ready(y)

    # Pure-JAX reference (same math as the PyTorch module).
    h = jnp.maximum(x @ w1.T + b1, 0.0)
    h = jnp.maximum(h @ w2.T + b2, 0.0)
    y_ref = h @ w3.T + b3

    assert y.shape == (B, 1)
    assert jnp.allclose(y, y_ref, atol=1e-5, rtol=1e-5)

    print("KERNEL_OK")
</pallas_src>

<mosaic_0001>
module attributes {stable_mosaic.version = 11 : i64} {
  func.func @mlp_kernel(%arg0: i32, %arg1: memref<1x128xf32, #tpu.memory_space<vmem>>, %arg2: memref<128x64xf32, #tpu.memory_space<vmem>>, %arg3: memref<1x64xf32, #tpu.memory_space<vmem>>, %arg4: memref<64x64xf32, #tpu.memory_space<vmem>>, %arg5: memref<1x64xf32, #tpu.memory_space<vmem>>, %arg6: memref<64x16xf32, #tpu.memory_space<vmem>>, %arg7: memref<1x16xf32, #tpu.memory_space<vmem>>, %arg8: memref<1x16xf32, #tpu.memory_space<vmem>>) attributes {dimension_semantics = [#tpu.dimension_semantics<parallel>], iteration_bounds = array<i64: 1>, scalar_prefetch = 0 : i64, scratch_operands = 0 : i64, tpu.core_type = #tpu.core_type<tc>, window_params = [{transform_indices = @transform_0, window_bounds = array<i64: 1, 128>}, {pipeline_mode = #tpu.pipeline_mode<synchronous>, transform_indices = @transform_1, window_bounds = array<i64: 128, 64>}, {pipeline_mode = #tpu.pipeline_mode<synchronous>, transform_indices = @transform_2, window_bounds = array<i64: 1, 64>}, {pipeline_mode = #tpu.pipeline_mode<synchronous>, transform_indices = @transform_3, window_bounds = array<i64: 64, 64>}, {pipeline_mode = #tpu.pipeline_mode<synchronous>, transform_indices = @transform_4, window_bounds = array<i64: 1, 64>}, {pipeline_mode = #tpu.pipeline_mode<synchronous>, transform_indices = @transform_5, window_bounds = array<i64: 64, 16>}, {pipeline_mode = #tpu.pipeline_mode<synchronous>, transform_indices = @transform_6, window_bounds = array<i64: 1, 16>}, {transform_indices = @transform_7, window_bounds = array<i64: 1, 16>}]} {
    %c0 = arith.constant 0 : index
    %c0_0 = arith.constant 0 : index
    %0 = vector.load %arg1[%c0, %c0_0] : memref<1x128xf32, #tpu.memory_space<vmem>>, vector<1x128xf32>
    %c0_1 = arith.constant 0 : index
    %c0_2 = arith.constant 0 : index
    %1 = vector.load %arg2[%c0_1, %c0_2] : memref<128x64xf32, #tpu.memory_space<vmem>>, vector<128x64xf32>
    %cst = arith.constant dense<0.000000e+00> : vector<1x64xf32>
    %2 = tpu.matmul %0, %1, %cst {dimension_numbers = #tpu.dot_dimension_numbers<[1], [0], [0], [1], [0, 0, 1, 1], [], []>} : vector<1x128xf32>, vector<128x64xf32>, vector<1x64xf32> -> vector<1x64xf32>
    %c0_3 = arith.constant 0 : index
    %c0_4 = arith.constant 0 : index
    %3 = vector.load %arg3[%c0_3, %c0_4] : memref<1x64xf32, #tpu.memory_space<vmem>>, vector<1x64xf32>
    %4 = arith.addf %2, %3 : vector<1x64xf32>
    %cst_5 = arith.constant 0.000000e+00 : f32
    %5 = vector.broadcast %cst_5 : f32 to vector<1x64xf32>
    %6 = arith.maximumf %4, %5 : vector<1x64xf32>
    %c0_6 = arith.constant 0 : index
    %c0_7 = arith.constant 0 : index
    %7 = vector.load %arg4[%c0_6, %c0_7] : memref<64x64xf32, #tpu.memory_space<vmem>>, vector<64x64xf32>
    %cst_8 = arith.constant dense<0.000000e+00> : vector<1x64xf32>
    %8 = tpu.matmul %6, %7, %cst_8 {dimension_numbers = #tpu.dot_dimension_numbers<[1], [0], [0], [1], [0, 0, 1, 1], [], []>} : vector<1x64xf32>, vector<64x64xf32>, vector<1x64xf32> -> vector<1x64xf32>
    %c0_9 = arith.constant 0 : index
    %c0_10 = arith.constant 0 : index
    %9 = vector.load %arg5[%c0_9, %c0_10] : memref<1x64xf32, #tpu.memory_space<vmem>>, vector<1x64xf32>
    %10 = arith.addf %8, %9 : vector<1x64xf32>
    %cst_11 = arith.constant 0.000000e+00 : f32
    %11 = vector.broadcast %cst_11 : f32 to vector<1x64xf32>
    %12 = arith.maximumf %10, %11 : vector<1x64xf32>
    %c0_12 = arith.constant 0 : index
    %c0_13 = arith.constant 0 : index
    %13 = vector.load %arg6[%c0_12, %c0_13] : memref<64x16xf32, #tpu.memory_space<vmem>>, vector<64x16xf32>
    %cst_14 = arith.constant dense<0.000000e+00> : vector<1x16xf32>
    %14 = tpu.matmul %12, %13, %cst_14 {dimension_numbers = #tpu.dot_dimension_numbers<[1], [0], [0], [1], [0, 0, 1, 1], [], []>} : vector<1x64xf32>, vector<64x16xf32>, vector<1x16xf32> -> vector<1x16xf32>
    %c0_15 = arith.constant 0 : index
    %c0_16 = arith.constant 0 : index
    %15 = vector.load %arg7[%c0_15, %c0_16] : memref<1x16xf32, #tpu.memory_space<vmem>>, vector<1x16xf32>
    %16 = arith.addf %14, %15 : vector<1x16xf32>
    %c0_17 = arith.constant 0 : index
    %c0_18 = arith.constant 0 : index
    %17 = vector.load %arg8[%c0_17, %c0_18] : memref<1x16xf32, #tpu.memory_space<vmem>>, vector<1x16xf32>
    tpu.vector_store %arg8[%c0_17, %c0_18], %16 {strides = array<i32>} : memref<1x16xf32, #tpu.memory_space<vmem>>, vector<1x16xf32>,
    return
  }
  func.func @transform_0(%arg0: i32) -> (i32, i32) {
    %c0_i32 = arith.constant 0 : i32
    %c0_i32_0 = arith.constant 0 : i32
    return %arg0, %c0_i32 : i32, i32
  }
  func.func @transform_1(%arg0: i32) -> (i32, i32) {
    %c0_i32 = arith.constant 0 : i32
    %c0_i32_0 = arith.constant 0 : i32
    %c0_i32_1 = arith.constant 0 : i32
    return %c0_i32, %c0_i32_0 : i32, i32
  }
  func.func @transform_2(%arg0: i32) -> (i32, i32) {
    %c0_i32 = arith.constant 0 : i32
    %c0_i32_0 = arith.constant 0 : i32
    %c0_i32_1 = arith.constant 0 : i32
    return %c0_i32, %c0_i32_0 : i32, i32
  }
  func.func @transform_3(%arg0: i32) -> (i32, i32) {
    %c0_i32 = arith.constant 0 : i32
    %c0_i32_0 = arith.constant 0 : i32
    %c0_i32_1 = arith.constant 0 : i32
    return %c0_i32, %c0_i32_0 : i32, i32
  }
  func.func @transform_4(%arg0: i32) -> (i32, i32) {
    %c0_i32 = arith.constant 0 : i32
    %c0_i32_0 = arith.constant 0 : i32
    %c0_i32_1 = arith.constant 0 : i32
    return %c0_i32, %c0_i32_0 : i32, i32
  }
  func.func @transform_5(%arg0: i32) -> (i32, i32) {
    %c0_i32 = arith.constant 0 : i32
    %c0_i32_0 = arith.constant 0 : i32
    %c0_i32_1 = arith.constant 0 : i32
    return %c0_i32, %c0_i32_0 : i32, i32
  }
  func.func @transform_6(%arg0: i32) -> (i32, i32) {
    %c0_i32 = arith.constant 0 : i32
    %c0_i32_0 = arith.constant 0 : i32
    %c0_i32_1 = arith.constant 0 : i32
    return %c0_i32, %c0_i32_0 : i32, i32
  }
  func.func @transform_7(%arg0: i32) -> (i32, i32) {
    %c0_i32 = arith.constant 0 : i32
    %c0_i32_0 = arith.constant 0 : i32
    return %arg0, %c0_i32 : i32, i32
  }
}

</mosaic_0001>

<llo_original>
// kernel: mlp_forward.1
$region0: #{mlp_forward.1}
  #allocation0 [shape = 'u32[]', space=smem, size = 0x4, offset = 0x4, fixed_abs, tag = 'smem constant byte address 0x4 - core index']
  #allocation1 [shape = 'u32[144,128]{1,0:T(1,128)}', space=vmem, size = 0x12000, scoped, tag = 'internal scratch']
  %s0 = inlined_call_operand.vmem [shape: f32[1,128], index: 0, kind: input, shape index: {}]
  %s1 = inlined_call_operand.vmem [shape: f32[128,64], index: 1, kind: input, shape index: {}]
  %s2 = inlined_call_operand.vmem [shape: f32[1,64], index: 2, kind: input, shape index: {}]
  %s3 = inlined_call_operand.vmem [shape: f32[64,64], index: 3, kind: input, shape index: {}]
  %s4 = inlined_call_operand.vmem [shape: f32[1,64], index: 4, kind: input, shape index: {}]
  %s5 = inlined_call_operand.vmem [shape: f32[64,16], index: 5, kind: input, shape index: {}]
  %s6 = inlined_call_operand.vmem [shape: f32[1,16], index: 6, kind: input, shape index: {}]
  %s7 = inlined_call_operand.vmem [shape: f32[1,16], index: 7, kind: output, shape index: {}]
  %s8 = sld [smem:[#allocation0]]
  $region38: #{mlp_forward.1} parent=0
    _
  %s10 = ssub.s32 1, %s8
  %s11 = scalar_select 0, %s10, %s8
  // Predicated region
  $region2: #{mlp_forward.1} parent=0 // pred_check
    _
  $region3: #{mlp_forward.1} parent=0 // pred_check_branch
    %13 = sbr.rel (0) target = $region5
  $region4: #{mlp_forward.1} parent=0 // pred_region
    _
  $region5: #{mlp_forward.1} parent=0 // pred_fallthru
    _
  // Predicated region
  $region6: #{mlp_forward.1} parent=0 // pred_check
    _
  $region7: #{mlp_forward.1} parent=0 // pred_check_branch
    %15 = sbr.rel (0) target = $region9
  $region8: #{mlp_forward.1} parent=0 // pred_region
    _
  $region9: #{mlp_forward.1} parent=0 // pred_fallthru
    _
  // Predicated region
  $region10: #{mlp_forward.1} parent=0 // pred_check
    _
  $region11: #{mlp_forward.1} parent=0 // pred_check_branch
    %17 = sbr.rel (0) target = $region13
  $region12: #{mlp_forward.1} parent=0 // pred_region
    _
  $region13: #{mlp_forward.1} parent=0 // pred_fallthru
    _
  // Predicated region
  $region14: #{mlp_forward.1} parent=0 // pred_check
    _
  $region15: #{mlp_forward.1} parent=0 // pred_check_branch
    %19 = sbr.rel (0) target = $region17
  $region16: #{mlp_forward.1} parent=0 // pred_region
    _
  $region17: #{mlp_forward.1} parent=0 // pred_fallthru
    _
  // Predicated region
  $region18: #{mlp_forward.1} parent=0 // pred_check
    _
  $region19: #{mlp_forward.1} parent=0 // pred_check_branch
    %21 = sbr.rel (0) target = $region21
  $region20: #{mlp_forward.1} parent=0 // pred_region
    _
  $region21: #{mlp_forward.1} parent=0 // pred_fallthru
    _
  // Predicated region
  $region22: #{mlp_forward.1} parent=0 // pred_check
    _
  $region23: #{mlp_forward.1} parent=0 // pred_check_branch
    %23 = sbr.rel (0) target = $region25
  $region24: #{mlp_forward.1} parent=0 // pred_region
    _
  $region25: #{mlp_forward.1} parent=0 // pred_fallthru
    _
  // Predicated region
  $region26: #{mlp_forward.1} parent=0 // pred_check
    _
  $region27: #{mlp_forward.1} parent=0 // pred_check_branch
    %25 = sbr.rel (0) target = $region29
  $region28: #{mlp_forward.1} parent=0 // pred_region
    _
  $region29: #{mlp_forward.1} parent=0 // pred_fallthru
    _
  %v26 = vld [vmem:[%s0] sm:$0x1]
  %v27 = vld [vmem:[%s1] sm:$0xff]
  %v28 = vld [vmem:[%s1 + $0x8] sm:$0xff]
  %v29 = vld [vmem:[%s1 + $0x10] sm:$0xff]
  %v30 = vld [vmem:[%s1 + $0x18] sm:$0xff]
  %v31 = vld [vmem:[%s1 + $0x20] sm:$0xff]
  %v32 = vld [vmem:[%s1 + $0x28] sm:$0xff]
  %v33 = vld [vmem:[%s1 + $0x30] sm:$0xff]
  %v34 = vld [vmem:[%s1 + $0x38] sm:$0xff]
  %v35 = vld [vmem:[%s1 + $0x40] sm:$0xff]
  %v36 = vld [vmem:[%s1 + $0x48] sm:$0xff]
  %v37 = vld [vmem:[%s1 + $0x50] sm:$0xff]
  %v38 = vld [vmem:[%s1 + $0x58] sm:$0xff]
  %v39 = vld [vmem:[%s1 + $0x60] sm:$0xff]
  %v40 = vld [vmem:[%s1 + $0x68] sm:$0xff]
  %v41 = vld [vmem:[%s1 + $0x70] sm:$0xff]
  %v42 = vld [vmem:[%s1 + $0x78] sm:$0xff]
  %v43 = vld [vmem:[%s2] sm:$0x1]
  %44 = vmatprep.subr.mxu0 0.0
  %45 = vmatpush1.msra.mxu0 %v42
  %46 = vmatprep.subr.mxu0 0.0
  %47 = vmatpush1.msra.mxu0 %v41
  %48 = vmatprep.subr.mxu0 0.0
  %49 = vmatpush1.msra.mxu0 %v40
  %50 = vmatprep.subr.mxu0 0.0
  %51 = vmatpush1.msra.mxu0 %v39
  %52 = vmatprep.subr.mxu0 0.0
  %53 = vmatpush1.msra.mxu0 %v38
  %54 = vmatprep.subr.mxu0 0.0
  %55 = vmatpush1.msra.mxu0 %v37
  %56 = vmatprep.subr.mxu0 0.0
  %57 = vmatpush1.msra.mxu0 %v36
  %58 = vmatprep.subr.mxu0 0.0
  %59 = vmatpush1.msra.mxu0 %v35
  %60 = vmatprep.subr.mxu0 0.0
  %61 = vmatpush1.msra.mxu0 %v34
  %62 = vmatprep.subr.mxu0 0.0
  %63 = vmatpush1.msra.mxu0 %v33
  %64 = vmatprep.subr.mxu0 0.0
  %65 = vmatpush1.msra.mxu0 %v32
  %66 = vmatprep.subr.mxu0 0.0
  %67 = vmatpush1.msra.mxu0 %v31
  %68 = vmatprep.subr.mxu0 0.0
  %69 = vmatpush1.msra.mxu0 %v30
  %70 = vmatprep.subr.mxu0 0.0
  %71 = vmatpush1.msra.mxu0 %v29
  %72 = vmatprep.subr.mxu0 0.0
  %73 = vmatpush1.msra.mxu0 %v28
  %74 = vmatprep.subr.mxu0 0.0
  %75 = vmatpush1.msra.mxu0 %v27
  %76 = vmatprep.subr.mxu0 0.0
  %77 = vmatpush2.msra.mxu0 0.0
  %78 = vmatprep.subr.mxu0 0.0
  %79 = vmatpush2.msra.mxu0 0.0
  %80 = vmatprep.subr.mxu0 0.0
  %81 = vmatpush2.msra.mxu0 0.0
  %82 = vmatprep.subr.mxu0 0.0
  %83 = vmatpush2.msra.mxu0 0.0
  %84 = vmatprep.subr.mxu0 0.0
  %85 = vmatpush2.msra.mxu0 0.0
  %86 = vmatprep.subr.mxu0 0.0
  %87 = vmatpush2.msra.mxu0 0.0
  %88 = vmatprep.subr.mxu0 0.0
  %89 = vmatpush2.msra.mxu0 0.0
  %90 = vmatprep.subr.mxu0 0.0
  %91 = vmatpush2.msra.mxu0 0.0
  %92 = vmatprep.subr.mxu0 0.0
  %93 = vmatpush2.msra.mxu0 0.0
  %94 = vmatprep.subr.mxu0 0.0
  %95 = vmatpush2.msra.mxu0 0.0
  %96 = vmatprep.subr.mxu0 0.0
  %97 = vmatpush2.msra.mxu0 0.0
  %98 = vmatprep.subr.mxu0 0.0
  %99 = vmatpush2.msra.mxu0 0.0
  %100 = vmatprep.subr.mxu0 0.0
  %101 = vmatpush2.msra.mxu0 0.0
  %102 = vmatprep.subr.mxu0 0.0
  %103 = vmatpush2.msra.mxu0 0.0
  %104 = vmatprep.subr.mxu0 0.0
  %105 = vmatpush2.msra.mxu0 0.0
  %106 = vmatprep.subr.mxu0 0.0
  %107 = vmatpush2.msra.mxu0 0.0
  %108 = vmatprep.mubr.f32.mxu0 0.0
  %109 = vmatmul.mubr.f32.gmra.mxu0 %v26
  %v110 = vpop.f32.mrf.mxu0
  %v111 = vadd.f32 %v43, %v110
  %v112 = vpop.f32.mrf.mxu0
  %113 = vdwg.mxu0
  %v114 = vmax.f32 %v111, 0.0
  %v115 = vld [vmem:[%s3] sm:$0xff]
  %v116 = vld [vmem:[%s3 + $0x8] sm:$0xff]
  %v117 = vld [vmem:[%s3 + $0x10] sm:$0xff]
  %v118 = vld [vmem:[%s3 + $0x18] sm:$0xff]
  %v119 = vld [vmem:[%s3 + $0x20] sm:$0xff]
  %v120 = vld [vmem:[%s3 + $0x28] sm:$0xff]
  %v121 = vld [vmem:[%s3 + $0x30] sm:$0xff]
  %v122 = vld [vmem:[%s3 + $0x38] sm:$0xff]
  %v123 = vld [vmem:[%s4] sm:$0x1]
  %vm124 = vcmask 523264
  %v126 = vsel %vm124, %v114, 0
  %128 = vmatprep.subr.mxu0 0.0
  %129 = vmatpush1.msra.mxu0 0.0
  %130 = vmatprep.subr.mxu0 0.0
  %131 = vmatpush1.msra.mxu0 0.0
  %132 = vmatprep.subr.mxu0 0.0
  %133 = vmatpush1.msra.mxu0 0.0
  %134 = vmatprep.subr.mxu0 0.0
  %135 = vmatpush1.msra.mxu0 0.0
  %136 = vmatprep.subr.mxu0 0.0
  %137 = vmatpush1.msra.mxu0 0.0
  %138 = vmatprep.subr.mxu0 0.0
  %139 = vmatpush1.msra.mxu0 0.0
  %140 = vmatprep.subr.mxu0 0.0
  %141 = vmatpush1.msra.mxu0 0.0
  %142 = vmatprep.subr.mxu0 0.0
  %143 = vmatpush1.msra.mxu0 0.0
  %144 = vmatprep.subr.mxu0 0.0
  %145 = vmatpush1.msra.mxu0 %v122
  %146 = vmatprep.subr.mxu0 0.0
  %147 = vmatpush1.msra.mxu0 %v121
  %148 = vmatprep.subr.mxu0 0.0
  %149 = vmatpush1.msra.mxu0 %v120
  %150 = vmatprep.subr.mxu0 0.0
  %151 = vmatpush1.msra.mxu0 %v119
  %152 = vmatprep.subr.mxu0 0.0
  %153 = vmatpush1.msra.mxu0 %v118
  %154 = vmatprep.subr.mxu0 0.0
  %155 = vmatpush1.msra.mxu0 %v117
  %156 = vmatprep.subr.mxu0 0.0
  %157 = vmatpush1.msra.mxu0 %v116
  %158 = vmatprep.subr.mxu0 0.0
  %159 = vmatpush1.msra.mxu0 %v115
  %160 = vmatprep.subr.mxu0 0.0
  %161 = vmatpush2.msra.mxu0 0.0
  %162 = vmatprep.subr.mxu0 0.0
  %163 = vmatpush2.msra.mxu0 0.0
  %164 = vmatprep.subr.mxu0 0.0
  %165 = vmatpush2.msra.mxu0 0.0
  %166 = vmatprep.subr.mxu0 0.0
  %167 = vmatpush2.msra.mxu0 0.0
  %168 = vmatprep.subr.mxu0 0.0
  %169 = vmatpush2.msra.mxu0 0.0
  %170 = vmatprep.subr.mxu0 0.0
  %171 = vmatpush2.msra.mxu0 0.0
  %172 = vmatprep.subr.mxu0 0.0
  %173 = vmatpush2.msra.mxu0 0.0
  %174 = vmatprep.subr.mxu0 0.0
  %175 = vmatpush2.msra.mxu0 0.0
  %176 = vmatprep.subr.mxu0 0.0
  %177 = vmatpush2.msra.mxu0 0.0
  %178 = vmatprep.subr.mxu0 0.0
  %179 = vmatpush2.msra.mxu0 0.0
  %180 = vmatprep.subr.mxu0 0.0
  %181 = vmatpush2.msra.mxu0 0.0
  %182 = vmatprep.subr.mxu0 0.0
  %183 = vmatpush2.msra.mxu0 0.0
  %184 = vmatprep.subr.mxu0 0.0
  %185 = vmatpush2.msra.mxu0 0.0
  %186 = vmatprep.subr.mxu0 0.0
  %187 = vmatpush2.msra.mxu0 0.0
  %188 = vmatprep.subr.mxu0 0.0
  %189 = vmatpush2.msra.mxu0 0.0
  %190 = vmatprep.subr.mxu0 0.0
  %191 = vmatpush2.msra.mxu0 0.0
  %192 = vmatprep.mubr.f32.mxu0 0.0
  %193 = vmatmul.mubr.f32.gmra.mxu0 %v126
  %v194 = vpop.f32.mrf.mxu0
  %v195 = vadd.f32 %v123, %v194
  %v196 = vpop.f32.mrf.mxu0
  %197 = vdwg.mxu0
  %v198 = vmax.f32 %v195, 0.0
  %v199 = vld [vmem:[%s5] sm:$0xff]
  %v200 = vld [vmem:[%s5 + $0x8] sm:$0xff]
  %v201 = vld [vmem:[%s5 + $0x10] sm:$0xff]
  %v202 = vld [vmem:[%s5 + $0x18] sm:$0xff]
  %v203 = vld [vmem:[%s5 + $0x20] sm:$0xff]
  %v204 = vld [vmem:[%s5 + $0x28] sm:$0xff]
  %v205 = vld [vmem:[%s5 + $0x30] sm:$0xff]
  %v206 = vld [vmem:[%s5 + $0x38] sm:$0xff]
  %v207 = vld [vmem:[%s6] sm:$0x1]
  %v209 = vsel %vm124, %v198, 0
  %211 = vmatprep.subr.mxu0 0.0
  %212 = vmatpush1.msra.mxu0 0.0
  %213 = vmatprep.subr.mxu0 0.0
  %214 = vmatpush1.msra.mxu0 0.0
  %215 = vmatprep.subr.mxu0 0.0
  %216 = vmatpush1.msra.mxu0 0.0
  %217 = vmatprep.subr.mxu0 0.0
  %218 = vmatpush1.msra.mxu0 0.0
  %219 = vmatprep.subr.mxu0 0.0
  %220 = vmatpush1.msra.mxu0 0.0
  %221 = vmatprep.subr.mxu0 0.0
  %222 = vmatpush1.msra.mxu0 0.0
  %223 = vmatprep.subr.mxu0 0.0
  %224 = vmatpush1.msra.mxu0 0.0
  %225 = vmatprep.subr.mxu0 0.0
  %226 = vmatpush1.msra.mxu0 0.0
  %227 = vmatprep.subr.mxu0 0.0
  %228 = vmatpush1.msra.mxu0 %v206
  %229 = vmatprep.subr.mxu0 0.0
  %230 = vmatpush1.msra.mxu0 %v205
  %231 = vmatprep.subr.mxu0 0.0
  %232 = vmatpush1.msra.mxu0 %v204
  %233 = vmatprep.subr.mxu0 0.0
  %234 = vmatpush1.msra.mxu0 %v203
  %235 = vmatprep.subr.mxu0 0.0
  %236 = vmatpush1.msra.mxu0 %v202
  %237 = vmatprep.subr.mxu0 0.0
  %238 = vmatpush1.msra.mxu0 %v201
  %239 = vmatprep.subr.mxu0 0.0
  %240 = vmatpush1.msra.mxu0 %v200
  %241 = vmatprep.subr.mxu0 0.0
  %242 = vmatpush1.msra.mxu0 %v199
  %243 = vmatprep.subr.mxu0 0.0
  %244 = vmatpush2.msra.mxu0 0.0
  %245 = vmatprep.subr.mxu0 0.0
  %246 = vmatpush2.msra.mxu0 0.0
  %247 = vmatprep.subr.mxu0 0.0
  %248 = vmatpush2.msra.mxu0 0.0
  %249 = vmatprep.subr.mxu0 0.0
  %250 = vmatpush2.msra.mxu0 0.0
  %251 = vmatprep.subr.mxu0 0.0
  %252 = vmatpush2.msra.mxu0 0.0
  %253 = vmatprep.subr.mxu0 0.0
  %254 = vmatpush2.msra.mxu0 0.0
  %255 = vmatprep.subr.mxu0 0.0
  %256 = vmatpush2.msra.mxu0 0.0
  %257 = vmatprep.subr.mxu0 0.0
  %258 = vmatpush2.msra.mxu0 0.0
  %259 = vmatprep.subr.mxu0 0.0
  %260 = vmatpush2.msra.mxu0 0.0
  %261 = vmatprep.subr.mxu0 0.0
  %262 = vmatpush2.msra.mxu0 0.0
  %263 = vmatprep.subr.mxu0 0.0
  %264 = vmatpush2.msra.mxu0 0.0
  %265 = vmatprep.subr.mxu0 0.0
  %266 = vmatpush2.msra.mxu0 0.0
  %267 = vmatprep.subr.mxu0 0.0
  %268 = vmatpush2.msra.mxu0 0.0
  %269 = vmatprep.subr.mxu0 0.0
  %270 = vmatpush2.msra.mxu0 0.0
  %271 = vmatprep.subr.mxu0 0.0
  %272 = vmatpush2.msra.mxu0 0.0
  %273 = vmatprep.subr.mxu0 0.0
  %274 = vmatpush2.msra.mxu0 0.0
  %275 = vmatprep.mubr.f32.mxu0 0.0
  %276 = vmatmul.mubr.f32.gmra.mxu0 %v209
  %v277 = vpop.f32.mrf.mxu0
  %v278 = vadd.f32 %v207, %v277
  %v279 = vpop.f32.mrf.mxu0
  %280 = vdwg.mxu0
  %vm281 = vcmask 122880
  %282 = vst.msk [vmem:[%s7] sm:$0x1] %vm281, %v278
  // Predicated region
  $region30: #{mlp_forward.1} parent=0 // pred_check
    _
  $region31: #{mlp_forward.1} parent=0 // pred_check_branch
    %284 = sbr.rel (0) target = $region33
  $region32: #{mlp_forward.1} parent=0 // pred_region
    _
  $region33: #{mlp_forward.1} parent=0 // pred_fallthru
    _
  // Predicated region
  $region34: #{mlp_forward.1} parent=0 // pred_check
    _
  $region35: #{mlp_forward.1} parent=0 // pred_check_branch
    %286 = sbr.rel (0) target = $region37
  $region36: #{mlp_forward.1} parent=0 // pred_region
    _
  $region37: #{mlp_forward.1} parent=0 // pred_fallthru
    _

</llo_original>
